<compile_context>
chip_gen: v7x
topology: tpu7x:2x2x1
jax: 0.10.0
libtpu: 0.0.40
codegen_flags: <defaults>
</compile_context>

<pallas_src>
import functools

import jax
import jax.numpy as jnp
from jax.experimental import pallas as pl
from jax.experimental.pallas import tpu as pltpu


def _round_up(x, m):
    return ((x + m - 1) // m) * m


def _vmem_limit_bytes():
    """Chip-aware scoped-VMEM budget with headroom for compiler temporaries."""
    cap = 64 << 20  # conservative fallback (v7x-sized)
    try:
        cap = int(getattr(pltpu.get_tpu_info(), "vmem_capacity_bytes", cap))
    except Exception:
        pass
    # v5e/v6e (128 MiB) -> 110 MiB; v7x (64 MiB) -> 52 MiB.
    return int(max(32 << 20, min(cap - (12 << 20), 110 << 20)))


def swiglu_kernel(x_ref, wgu_ref, wd_ref, o_ref, *scratch, th):
    # scratch is () when the output dtype is f32: accumulate straight into the
    # resident output block.  Otherwise scratch[0] is the f32 accumulator.
    use_scratch = bool(scratch)
    acc_ref = scratch[0] if use_scratch else o_ref

    h = pl.program_id(1)

    @pl.when(h == 0)
    def _():
        acc_ref[...] = jnp.zeros_like(acc_ref)

    x = x_ref[...]                                           # (tm, E_pad), bf16
    # One fused MXU matmul for gate+up: (tm, E_pad) @ (E_pad, 2*th) -> f32.
    gu = jnp.dot(x, wgu_ref[...], preferred_element_type=jnp.float32)
    gate = gu[:, :th]
    up = gu[:, th:]
    act = gate * jax.nn.sigmoid(gate) * up                   # SiLU(gate) * up, f32
    # Down-projection contribution of this hidden chunk (f32 accumulation).
    contrib = jnp.dot(act.astype(wd_ref.dtype), wd_ref[...],
                      preferred_element_type=jnp.float32)
    acc_ref[...] += contrib.astype(acc_ref.dtype)

    if use_scratch:
        @pl.when(h == pl.num_programs(1) - 1)
        def _():
            o_ref[...] = acc_ref[...].astype(o_ref.dtype)


def prepare_swiglu_weights(w_gate, w_up, w_down, *, th=512, dtype=jnp.bfloat16):
    """One-time weight packing: cast to the MXU operand dtype (bf16 default),
    transpose, pad E/H to multiples of 128, and fuse gate+up per hidden chunk.
    Call once at parameter-load time, not per forward."""
    H, E = w_gate.shape
    dtype = jnp.dtype(dtype)
    th = _round_up(min(th, _round_up(H, 128)), 128)
    e_pad = _round_up(E, 128)
    h_pad = _round_up(H, th)
    nh = h_pad // th

    def pad2(a, r, c):
        a = a.astype(dtype)
        if a.shape == (r, c):
            return a
        return jnp.zeros((r, c), dtype).at[:a.shape[0], :a.shape[1]].set(a)

    wg_t = pad2(w_gate.T, e_pad, h_pad)        # (E_pad, H_pad)
    wu_t = pad2(w_up.T, e_pad, h_pad)          # (E_pad, H_pad)
    wd_t = pad2(w_down.T, h_pad, e_pad)        # (H_pad, E_pad)

    # Fuse per hidden chunk: wgu[h] = [Wg^T[:, chunk h] | Wu^T[:, chunk h]]
    wgu = jnp.concatenate(
        [wg_t.reshape(e_pad, nh, th), wu_t.reshape(e_pad, nh, th)], axis=-1)
    wgu = jnp.transpose(wgu, (1, 0, 2))        # (nh, E_pad, 2*th)
    wd = wd_t.reshape(nh, th, e_pad)           # (nh, th, E_pad)
    return wgu, wd


def swiglu_packed(x, wgu, wd, *, tm=512, vmem_limit_bytes=None):
    """x: [B, S, E]; wgu/wd: outputs of prepare_swiglu_weights (bf16 by default)."""
    B, S, E = x.shape
    nh, e_pad, two_th = wgu.shape
    th = two_th // 2
    h_pad = nh * th
    M = B * S

    # Multiple of 16 so bf16 (2 rows/sublane) stays densely packed even for
    # decode-sized M; large default tm keeps v6e above the HBM/MXU crossover.
    # (On v7x megacore, shrink tm only when compute-bound: halving tm doubles
    # weight re-streaming, which hurts the HBM-bound decode case.)
    tm = _round_up(min(tm, _round_up(M, 16)), 16)
    m_pad = _round_up(M, tm)

    cdtype = wgu.dtype                          # MXU operand dtype (bf16 default)
    x2 = x.reshape(M, E).astype(cdtype)
    if (M, E) != (m_pad, e_pad):
        x2 = jnp.zeros((m_pad, e_pad), cdtype).at[:M, :E].set(x2)

    out_dtype = x.dtype
    # f32 output: accumulate directly into the resident output block (no scratch).
    acc_in_output = jnp.dtype(out_dtype) == jnp.dtype(jnp.float32)
    scratch_shapes = [] if acc_in_output else [pltpu.VMEM((tm, e_pad), jnp.float32)]

    n_m_tiles = m_pad // tm
    cost = pl.CostEstimate(
        flops=6 * m_pad * e_pad * h_pad,
        transcendentals=m_pad * h_pad,
        bytes_accessed=int(
            x2.size * x2.dtype.itemsize
            + m_pad * e_pad * jnp.dtype(out_dtype).itemsize
            # weights are re-streamed once per M tile
            + n_m_tiles * (wgu.size * wgu.dtype.itemsize
                           + wd.size * wd.dtype.itemsize)),
    )

    if vmem_limit_bytes is None:
        vmem_limit_bytes = _vmem_limit_bytes()

    out = pl.pallas_call(
        functools.partial(swiglu_kernel, th=th),
        out_shape=jax.ShapeDtypeStruct((m_pad, e_pad), out_dtype),
        grid_spec=pltpu.PrefetchScalarGridSpec(
            num_scalar_prefetch=0,
            grid=(n_m_tiles, nh),                                        # reduction axis last
            in_specs=[
                pl.BlockSpec((tm, e_pad), lambda i, h: (i, 0)),               # x tile
                pl.BlockSpec((None, e_pad, 2 * th), lambda i, h: (h, 0, 0)),  # fused Wg|Wu chunk
                pl.BlockSpec((None, th, e_pad), lambda i, h: (h, 0, 0)),      # Wd chunk
            ],
            out_specs=pl.BlockSpec((tm, e_pad), lambda i, h: (i, 0)),
            scratch_shapes=scratch_shapes,
        ),
        compiler_params=pltpu.CompilerParams(
            dimension_semantics=("parallel", "arbitrary"),
            vmem_limit_bytes=vmem_limit_bytes,
        ),
        cost_estimate=cost,
    )(x2, wgu, wd)

    return out[:M, :E].reshape(B, S, E)


def swiglu(x, w_gate, w_up, w_down, *, tm=512, th=512, compute_dtype=jnp.bfloat16):
    """Convenience wrapper (packs weights per call; production code should call
    prepare_swiglu_weights() once at load time and then swiglu_packed())."""
    wgu, wd = prepare_swiglu_weights(w_gate, w_up, w_down, th=th, dtype=compute_dtype)
    return swiglu_packed(x, wgu, wd, tm=tm)


def swiglu_ref(x, w_gate, w_up, w_down):
    gate = x @ w_gate.T
    gate = gate * jax.nn.sigmoid(gate)
    up = x @ w_up.T
    return (gate * up) @ w_down.T


if __name__ == "__main__":
    # Config: embed_dim=32, ffn_hidden_dim=64; batch=2, seq=8.
    B, S, E, H = 2, 8, 32, 64

    key = jax.random.PRNGKey(0)
    kx, kg, ku, kd = jax.random.split(key, 4)

    x = jax.random.normal(kx, (B, S, E), dtype=jnp.float32)
    # Same shapes as nn.Linear weights (out_features, in_features), bias=False.
    w_gate = jax.random.normal(kg, (H, E), dtype=jnp.float32) * (1.0 / E) ** 0.5
    w_up = jax.random.normal(ku, (H, E), dtype=jnp.float32) * (1.0 / E) ** 0.5
    w_down = jax.random.normal(kd, (E, H), dtype=jnp.float32) * (1.0 / H) ** 0.5

    ref = swiglu_ref(x, w_gate, w_up, w_down)

    # 1) f32 compute path (exact check of the kernel math; no-scratch variant).
    out_f32 = jax.block_until_ready(
        swiglu(x, w_gate, w_up, w_down, compute_dtype=jnp.float32))
    assert out_f32.shape == (B, S, E)
    assert jnp.allclose(out_f32, ref, atol=1e-4, rtol=1e-4), "f32 path mismatch"

    # 2) Default bf16 operand path (production default; MXU-rate friendly).
    out_bf16 = jax.block_until_ready(swiglu(x, w_gate, w_up, w_down))
    assert out_bf16.shape == (B, S, E)
    assert jnp.allclose(out_bf16, ref, atol=5e-2, rtol=5e-2), "bf16 path mismatch"

    # 3) bf16 activations (exercises the f32-scratch accumulator variant).
    out_act_bf16 = jax.block_until_ready(
        swiglu(x.astype(jnp.bfloat16), w_gate, w_up, w_down))
    assert out_act_bf16.dtype == jnp.bfloat16
    assert jnp.allclose(out_act_bf16.astype(jnp.float32), ref,
                        atol=6e-2, rtol=6e-2), "bf16-activation path mismatch"

    print("KERNEL_OK")
</pallas_src>

<mosaic_0001>
module attributes {stable_mosaic.version = 11 : i64} {
  func.func @swiglu_kernel(%arg0: i32, %arg1: i32, %arg2: memref<16x128xf32, #tpu.memory_space<vmem>>, %arg3: memref<1x128x256xf32, #tpu.memory_space<vmem>>, %arg4: memref<1x128x128xf32, #tpu.memory_space<vmem>>, %arg5: memref<16x128xf32, #tpu.memory_space<vmem>>) attributes {dimension_semantics = [#tpu.dimension_semantics<parallel>, #tpu.dimension_semantics<arbitrary>], iteration_bounds = array<i64: 1, 1>, scalar_prefetch = 0 : i64, scratch_operands = 0 : i64, tpu.core_type = #tpu.core_type<tc>, window_params = [{transform_indices = @transform_0, window_bounds = array<i64: 16, 128>}, {transform_indices = @transform_1, window_bounds = array<i64: 1, 128, 256>}, {transform_indices = @transform_2, window_bounds = array<i64: 1, 128, 128>}, {transform_indices = @transform_3, window_bounds = array<i64: 16, 128>}]} {
    %c0_i32 = arith.constant 0 : i32
    %0 = arith.cmpi eq, %arg1, %c0_i32 : i32
    %1 = arith.extui %0 : i1 to i32
    %c0_i32_0 = arith.constant 0 : i32
    %2 = arith.cmpi ne, %1, %c0_i32_0 : i32
    scf.if %2 {
      %cst_14 = arith.constant 0.000000e+00 : f32
      %22 = vector.broadcast %cst_14 : f32 to vector<16x128xf32>
      %c0_15 = arith.constant 0 : index
      %c0_16 = arith.constant 0 : index
      %23 = vector.load %arg5[%c0_15, %c0_16] : memref<16x128xf32, #tpu.memory_space<vmem>>, vector<16x128xf32>
      tpu.vector_store %arg5[%c0_15, %c0_16], %22 {strides = array<i32>} : memref<16x128xf32, #tpu.memory_space<vmem>>, vector<16x128xf32>,
    } else {
    }
    %c0 = arith.constant 0 : index
    %c0_1 = arith.constant 0 : index
    %3 = vector.load %arg2[%c0, %c0_1] : memref<16x128xf32, #tpu.memory_space<vmem>>, vector<16x128xf32>
    %c0_2 = arith.constant 0 : index
    %c0_3 = arith.constant 0 : index
    %c0_4 = arith.constant 0 : index
    %4 = vector.load %arg3[%c0_2, %c0_3, %c0_4] : memref<1x128x256xf32, #tpu.memory_space<vmem>>, vector<1x128x256xf32>
    %5 = vector.shape_cast %4 : vector<1x128x256xf32> to vector<128x256xf32>
    %cst = arith.constant dense<0.000000e+00> : vector<16x256xf32>
    %6 = tpu.matmul %3, %5, %cst {dimension_numbers = #tpu.dot_dimension_numbers<[1], [0], [0], [1], [0, 0, 1, 1], [], []>} : vector<16x128xf32>, vector<128x256xf32>, vector<16x256xf32> -> vector<16x256xf32>
    %7 = vector.extract_strided_slice %6 {offsets = [0, 0], sizes = [16, 128], strides = [1, 1]} : vector<16x256xf32> to vector<16x128xf32>
    %8 = vector.extract_strided_slice %6 {offsets = [0, 128], sizes = [16, 128], strides = [1, 1]} : vector<16x256xf32> to vector<16x128xf32>
    %9 = arith.negf %7 : vector<16x128xf32>
    %10 = math.exp %9 : vector<16x128xf32>
    %cst_5 = arith.constant 1.000000e+00 : f32
    %11 = vector.broadcast %cst_5 : f32 to vector<16x128xf32>
    %12 = arith.addf %11, %10 : vector<16x128xf32>
    %13 = arith.divf %11, %12 : vector<16x128xf32>
    %14 = arith.mulf %7, %13 : vector<16x128xf32>
    %15 = arith.mulf %14, %8 : vector<16x128xf32>
    %c0_6 = arith.constant 0 : index
    %c0_7 = arith.constant 0 : index
    %c0_8 = arith.constant 0 : index
    %16 = vector.load %arg4[%c0_6, %c0_7, %c0_8] : memref<1x128x128xf32, #tpu.memory_space<vmem>>, vector<1x128x128xf32>
    %17 = vector.shape_cast %16 : vector<1x128x128xf32> to vector<128x128xf32>
    %cst_9 = arith.constant dense<0.000000e+00> : vector<16x128xf32>
    %18 = tpu.matmul %15, %17, %cst_9 {dimension_numbers = #tpu.dot_dimension_numbers<[1], [0], [0], [1], [0, 0, 1, 1], [], []>} : vector<16x128xf32>, vector<128x128xf32>, vector<16x128xf32> -> vector<16x128xf32>
    %c0_10 = arith.constant 0 : index
    %c0_11 = arith.constant 0 : index
    %19 = vector.load %arg5[%c0_10, %c0_11] : memref<16x128xf32, #tpu.memory_space<vmem>>, vector<16x128xf32>
    %20 = arith.addf %19, %18 : vector<16x128xf32>
    %c0_12 = arith.constant 0 : index
    %c0_13 = arith.constant 0 : index
    %21 = vector.load %arg5[%c0_12, %c0_13] : memref<16x128xf32, #tpu.memory_space<vmem>>, vector<16x128xf32>
    tpu.vector_store %arg5[%c0_12, %c0_13], %20 {strides = array<i32>} : memref<16x128xf32, #tpu.memory_space<vmem>>, vector<16x128xf32>,
    return
  }
  func.func @transform_0(%arg0: i32, %arg1: i32) -> (i32, i32) {
    %c0_i32 = arith.constant 0 : i32
    %c0_i32_0 = arith.constant 0 : i32
    return %arg0, %c0_i32 : i32, i32
  }
  func.func @transform_1(%arg0: i32, %arg1: i32) -> (i32, i32, i32) {
    %c0_i32 = arith.constant 0 : i32
    %c0_i32_0 = arith.constant 0 : i32
    %c0_i32_1 = arith.constant 0 : i32
    return %arg1, %c0_i32, %c0_i32_0 : i32, i32, i32
  }
  func.func @transform_2(%arg0: i32, %arg1: i32) -> (i32, i32, i32) {
    %c0_i32 = arith.constant 0 : i32
    %c0_i32_0 = arith.constant 0 : i32
    %c0_i32_1 = arith.constant 0 : i32
    return %arg1, %c0_i32, %c0_i32_0 : i32, i32, i32
  }
  func.func @transform_3(%arg0: i32, %arg1: i32) -> (i32, i32) {
    %c0_i32 = arith.constant 0 : i32
    %c0_i32_0 = arith.constant 0 : i32
    return %arg0, %c0_i32 : i32, i32
  }
}

</mosaic_0001>

<llo_original>
// kernel: tpu_custom_call.1
$region0: #{tpu_custom_call.1}
  #allocation0 [shape = 'u32[]', space=smem, size = 0x4, offset = 0x4, fixed_abs, tag = 'smem constant byte address 0x4 - core index']
  #allocation1 [shape = 'u32[144,128]{1,0:T(1,128)}', space=vmem, size = 0x12000, scoped, tag = 'internal scratch']
  %s0 = inlined_call_operand.hbm [shape: f32[16,128], index: 0, kind: input, shape index: {}]
  %s1 = inlined_call_operand.hbm [shape: f32[1,128,256], index: 1, kind: input, shape index: {}]
  %s2 = inlined_call_operand.hbm [shape: f32[1,128,128], index: 2, kind: input, shape index: {}]
  %s3 = inlined_call_operand.hbm [shape: f32[16,128], index: 3, kind: output, shape index: {}]
  %s4 = sld [smem:[#allocation0]]
  $region38: #{tpu_custom_call.1} parent=0
    _
  %s6 = ssub.s32 1, %s4
  %s7 = scalar_select 0, %s6, %s4
  $region1: #{tpu_custom_call.1} parent=0
    #allocation2 [shape = 'u8[8192]{0}', space=vmem, size = 0x2000, scoped, tag = 'input window, operand 0, single buffered']
    #allocation3 [shape = 's32[1]{0}', space=sflag, size = 0x4, scoped, tag = 'scoped memory for tpu_custom_call.1']
    #allocation4 [shape = 's32[1]{0}', space=sflag, size = 0x4, scoped, tag = 'scoped memory for tpu_custom_call.1']
    #allocation5 [shape = 'u8[131072]{0}', space=vmem, size = 0x20000, scoped, tag = 'input window, operand 1, single buffered']
    #allocation6 [shape = 's32[1]{0}', space=sflag, size = 0x4, scoped, tag = 'scoped memory for tpu_custom_call.1']
    #allocation7 [shape = 'u8[65536]{0}', space=vmem, size = 0x10000, scoped, tag = 'input window, operand 2, single buffered']
    #allocation8 [shape = 'u8[8192]{0}', space=vmem, size = 0x2000, scoped, tag = 'output window, operand 0, single buffered']
    %8 = vsyncpa [#allocation3], 0
    %9 = vsyncpa [#allocation6], 0
    %10 = vsyncpa [#allocation4], 0
    // Predicated region
    $region2: #{tpu_custom_call.1} parent=1 // pred_check
      _
    $region3: #{tpu_custom_call.1} parent=1 // pred_check_branch
      %12 = sbr.rel (0) target = $region5
    $region4: #{tpu_custom_call.1} parent=1 // pred_region
      %s14 = ssub.s32 256, 256
      %15 = vsyncadd [#allocation3], %s14
      %s16 = sshll.u32 [#allocation2], 4
      %s17 = int_to_ptr.vmem [resolvable:$true] %s16
      %22 = dma.hbm_to_vmem [thread:$0]  %s0, 256, %s17, [#allocation3], 128, 128, 8
    $region5: #{tpu_custom_call.1} parent=1 // pred_fallthru
      _
    // Predicated region
    $region6: #{tpu_custom_call.1} parent=1 // pred_check
      _
    $region7: #{tpu_custom_call.1} parent=1 // pred_check_branch
      %24 = sbr.rel (0) target = $region9
    $region8: #{tpu_custom_call.1} parent=1 // pred_region
      %s26 = ssub.s32 4096, 4096
      %27 = vsyncadd [#allocation6], %s26
      %s28 = sshll.u32 [#allocation5], 4
      %s29 = int_to_ptr.vmem [resolvable:$true] %s28
      %34 = dma.hbm_to_vmem [thread:$0]  %s1, 4096, %s29, [#allocation6], 256, 256, 16
    $region9: #{tpu_custom_call.1} parent=1 // pred_fallthru
      _
    // Predicated region
    $region10: #{tpu_custom_call.1} parent=1 // pred_check
      _
    $region11: #{tpu_custom_call.1} parent=1 // pred_check_branch
      %36 = sbr.rel (0) target = $region13
    $region12: #{tpu_custom_call.1} parent=1 // pred_region
      %s38 = ssub.s32 2048, 2048
      %39 = vsyncadd [#allocation6], %s38
      %s40 = sshll.u32 [#allocation7], 4
      %s41 = int_to_ptr.vmem [resolvable:$true] %s40
      %46 = dma.hbm_to_vmem [thread:$0]  %s2, 2048, %s41, [#allocation6], 128, 128, 8
    $region13: #{tpu_custom_call.1} parent=1 // pred_fallthru
      _
    // Predicated region
    $region14: #{tpu_custom_call.1} parent=1 // pred_check
      _
    $region15: #{tpu_custom_call.1} parent=1 // pred_check_branch
      %48 = sbr.rel (0) target = $region17
    $region16: #{tpu_custom_call.1} parent=1 // pred_region
      %49 = dma.done [#allocation3], 256
    $region17: #{tpu_custom_call.1} parent=1 // pred_fallthru
      _
    // Predicated region
    $region18: #{tpu_custom_call.1} parent=1 // pred_check
      _
    $region19: #{tpu_custom_call.1} parent=1 // pred_check_branch
      %51 = sbr.rel (0) target = $region21
    $region20: #{tpu_custom_call.1} parent=1 // pred_region
      %52 = dma.done [#allocation6], 4096
    $region21: #{tpu_custom_call.1} parent=1 // pred_fallthru
      _
    // Predicated region
    $region22: #{tpu_custom_call.1} parent=1 // pred_check
      _
    $region23: #{tpu_custom_call.1} parent=1 // pred_check_branch
      %54 = sbr.rel (0) target = $region25
    $region24: #{tpu_custom_call.1} parent=1 // pred_region
      %55 = dma.done [#allocation6], 2048
    $region25: #{tpu_custom_call.1} parent=1 // pred_fallthru
      _
    %p56 = scmp.eq.s32.totalorder 0, 0
    // Predicated region
    $region26: #{tpu_custom_call.1} parent=1 // pred_check
      %p57 = pneg %p56
    $region27: #{tpu_custom_call.1} parent=1 // pred_check_branch
      %59 = sbr.rel (%p57) target = $region29
    $region28: #{tpu_custom_call.1} parent=1 // pred_region
      %60 = vst [vmem:[#allocation8] sm:$0xff] 0.0
      %61 = vst [vmem:[#allocation8 + $0x8] sm:$0xff] 0.0
    $region29: #{tpu_custom_call.1} parent=1 // pred_fallthru
      _
    %v62 = vld [vmem:[#allocation2] sm:$0xff]
    %v63 = vld [vmem:[#allocation2 + $0x8] sm:$0xff]
    %v64 = vld [vmem:[#allocation5] sm:$0xff]
    %v65 = vld [vmem:[#allocation5 + $0x8] sm:$0xff]
    %v66 = vld [vmem:[#allocation5 + $0x10] sm:$0xff]
    %v67 = vld [vmem:[#allocation5 + $0x18] sm:$0xff]
    %v68 = vld [vmem:[#allocation5 + $0x20] sm:$0xff]
    %v69 = vld [vmem:[#allocation5 + $0x28] sm:$0xff]
    %v70 = vld [vmem:[#allocation5 + $0x30] sm:$0xff]
    %v71 = vld [vmem:[#allocation5 + $0x38] sm:$0xff]
    %v72 = vld [vmem:[#allocation5 + $0x40] sm:$0xff]
    %v73 = vld [vmem:[#allocation5 + $0x48] sm:$0xff]
    %v74 = vld [vmem:[#allocation5 + $0x50] sm:$0xff]
    %v75 = vld [vmem:[#allocation5 + $0x58] sm:$0xff]
    %v76 = vld [vmem:[#allocation5 + $0x60] sm:$0xff]
    %v77 = vld [vmem:[#allocation5 + $0x68] sm:$0xff]
    %v78 = vld [vmem:[#allocation5 + $0x70] sm:$0xff]
    %v79 = vld [vmem:[#allocation5 + $0x78] sm:$0xff]
    %v80 = vld [vmem:[#allocation5 + $0x80] sm:$0xff]
    %v81 = vld [vmem:[#allocation5 + $0x88] sm:$0xff]
    %v82 = vld [vmem:[#allocation5 + $0x90] sm:$0xff]
    %v83 = vld [vmem:[#allocation5 + $0x98] sm:$0xff]
    %v84 = vld [vmem:[#allocation5 + $0xa0] sm:$0xff]
    %v85 = vld [vmem:[#allocation5 + $0xa8] sm:$0xff]
    %v86 = vld [vmem:[#allocation5 + $0xb0] sm:$0xff]
    %v87 = vld [vmem:[#allocation5 + $0xb8] sm:$0xff]
    %v88 = vld [vmem:[#allocation5 + $0xc0] sm:$0xff]
    %v89 = vld [vmem:[#allocation5 + $0xc8] sm:$0xff]
    %v90 = vld [vmem:[#allocation5 + $0xd0] sm:$0xff]
    %v91 = vld [vmem:[#allocation5 + $0xd8] sm:$0xff]
    %v92 = vld [vmem:[#allocation5 + $0xe0] sm:$0xff]
    %v93 = vld [vmem:[#allocation5 + $0xe8] sm:$0xff]
    %v94 = vld [vmem:[#allocation5 + $0xf0] sm:$0xff]
    %v95 = vld [vmem:[#allocation5 + $0xf8] sm:$0xff]
    %96 = vmatprep.subr.mxu0 %v65
    %97 = vmatpush1.msra.mxu0 %v64
    %98 = vmatprep.subr.mxu0 %v67
    %99 = vmatpush1.msra.mxu0 %v66
    %100 = vmatprep.subr.mxu0 %v69
    %101 = vmatpush1.msra.mxu0 %v68
    %102 = vmatprep.subr.mxu0 %v71
    %103 = vmatpush1.msra.mxu0 %v70
    %104 = vmatprep.subr.mxu0 %v73
    %105 = vmatpush1.msra.mxu0 %v72
    %106 = vmatprep.subr.mxu0 %v75
    %107 = vmatpush1.msra.mxu0 %v74
    %108 = vmatprep.subr.mxu0 %v77
    %109 = vmatpush1.msra.mxu0 %v76
    %110 = vmatprep.subr.mxu0 %v79
    %111 = vmatpush1.msra.mxu0 %v78
    %112 = vmatprep.subr.mxu0 %v81
    %113 = vmatpush1.msra.mxu0 %v80
    %114 = vmatprep.subr.mxu0 %v83
    %115 = vmatpush1.msra.mxu0 %v82
    %116 = vmatprep.subr.mxu0 %v85
    %117 = vmatpush1.msra.mxu0 %v84
    %118 = vmatprep.subr.mxu0 %v87
    %119 = vmatpush1.msra.mxu0 %v86
    %120 = vmatprep.subr.mxu0 %v89
    %121 = vmatpush1.msra.mxu0 %v88
    %122 = vmatprep.subr.mxu0 %v91
    %123 = vmatpush1.msra.mxu0 %v90
    %124 = vmatprep.subr.mxu0 %v93
    %125 = vmatpush1.msra.mxu0 %v92
    %126 = vmatprep.subr.mxu0 %v95
    %127 = vmatpush1.msra.mxu0 %v94
    %128 = vmatprep.subr.mxu0 0.0
    %129 = vmatpush1.msra.mxu0 0.0
    %130 = vmatprep.subr.mxu0 0.0
    %131 = vmatpush1.msra.mxu0 0.0
    %132 = vmatprep.subr.mxu0 0.0
    %133 = vmatpush1.msra.mxu0 0.0
    %134 = vmatprep.subr.mxu0 0.0
    %135 = vmatpush1.msra.mxu0 0.0
    %136 = vmatprep.subr.mxu0 0.0
    %137 = vmatpush1.msra.mxu0 0.0
    %138 = vmatprep.subr.mxu0 0.0
    %139 = vmatpush1.msra.mxu0 0.0
    %140 = vmatprep.subr.mxu0 0.0
    %141 = vmatpush1.msra.mxu0 0.0
    %142 = vmatprep.subr.mxu0 0.0
    %143 = vmatpush1.msra.mxu0 0.0
    %144 = vmatprep.subr.mxu0 0.0
    %145 = vmatpush1.msra.mxu0 0.0
    %146 = vmatprep.subr.mxu0 0.0
    %147 = vmatpush1.msra.mxu0 0.0
    %148 = vmatprep.subr.mxu0 0.0
    %149 = vmatpush1.msra.mxu0 0.0
    %150 = vmatprep.subr.mxu0 0.0
    %151 = vmatpush1.msra.mxu0 0.0
    %152 = vmatprep.subr.mxu0 0.0
    %153 = vmatpush1.msra.mxu0 0.0
    %154 = vmatprep.subr.mxu0 0.0
    %155 = vmatpush1.msra.mxu0 0.0
    %156 = vmatprep.subr.mxu0 0.0
    %157 = vmatpush1.msra.mxu0 0.0
    %158 = vmatprep.subr.mxu0 0.0
    %159 = vmatpush1.msra.mxu0 0.0
    %160 = vmatprep.mubr.f32.mxu0 0.0
    %161 = vmatmul.mubr.f32.gmra.mrb[0].mxu0 %v62
    %v162 = vpop.f32.mrb[0].mxu0
    %v163 = vadd.f32 0.0, %v162
    %v164 = vpop.f32.mrb[0].mxu0
    %v165 = vadd.f32 0.0, %v164
    %166 = vmatprep.mubr.f32.mxu0 0.0
    %167 = vmatmul.mubr.f32.gmra.mrb[0].mxu0 %v63
    %v168 = vpop.f32.mrb[0].mxu0
    %v169 = vadd.f32 0.0, %v168
    %v170 = vpop.f32.mrb[0].mxu0
    %v171 = vadd.f32 0.0, %v170
    %172 = vdwg.mxu0
    %v173 = vxor.u32 %v163, 2147483648
    %v174 = vxor.u32 %v169, 2147483648
    %v175 = vmul.f32 %v173, 1.442695
    %v176 = vpow.pop %v175
    %v177 = vmul.f32 %v174, 1.442695
    %v178 = vpow.pop %v177
    %v179 = vadd.f32 %v176, 1.0
    %v180 = vadd.f32 %v178, 1.0
    %v181 = vrcp.pop %v179
    %v182 = vmul.f32 1.0, %v181
    %v183 = vrcp.pop %v180
    %v184 = vmul.f32 1.0, %v183
    %v185 = vmul.f32 %v163, %v182
    %v186 = vmul.f32 %v169, %v184
    %v187 = vmul.f32 %v185, %v165
    %v188 = vmul.f32 %v186, %v171
    %v189 = vld [vmem:[#allocation7] sm:$0xff]
    %v190 = vld [vmem:[#allocation7 + $0x8] sm:$0xff]
    %v191 = vld [vmem:[#allocation7 + $0x10] sm:$0xff]
    %v192 = vld [vmem:[#allocation7 + $0x18] sm:$0xff]
    %v193 = vld [vmem:[#allocation7 + $0x20] sm:$0xff]
    %v194 = vld [vmem:[#allocation7 + $0x28] sm:$0xff]
    %v195 = vld [vmem:[#allocation7 + $0x30] sm:$0xff]
    %v196 = vld [vmem:[#allocation7 + $0x38] sm:$0xff]
    %v197 = vld [vmem:[#allocation7 + $0x40] sm:$0xff]
    %v198 = vld [vmem:[#allocation7 + $0x48] sm:$0xff]
    %v199 = vld [vmem:[#allocation7 + $0x50] sm:$0xff]
    %v200 = vld [vmem:[#allocation7 + $0x58] sm:$0xff]
    %v201 = vld [vmem:[#allocation7 + $0x60] sm:$0xff]
    %v202 = vld [vmem:[#allocation7 + $0x68] sm:$0xff]
    %v203 = vld [vmem:[#allocation7 + $0x70] sm:$0xff]
    %v204 = vld [vmem:[#allocation7 + $0x78] sm:$0xff]
    %205 = vmatprep.subr.mxu0 0.0
    %206 = vmatpush1.msra.mxu0 %v189
    %207 = vmatprep.subr.mxu0 0.0
    %208 = vmatpush1.msra.mxu0 %v190
    %209 = vmatprep.subr.mxu0 0.0
    %210 = vmatpush1.msra.mxu0 %v191
    %211 = vmatprep.subr.mxu0 0.0
    %212 = vmatpush1.msra.mxu0 %v192
    %213 = vmatprep.subr.mxu0 0.0
    %214 = vmatpush1.msra.mxu0 %v193
    %215 = vmatprep.subr.mxu0 0.0
    %216 = vmatpush1.msra.mxu0 %v194
    %217 = vmatprep.subr.mxu0 0.0
    %218 = vmatpush1.msra.mxu0 %v195
    %219 = vmatprep.subr.mxu0 0.0
    %220 = vmatpush1.msra.mxu0 %v196
    %221 = vmatprep.subr.mxu0 0.0
    %222 = vmatpush1.msra.mxu0 %v197
    %223 = vmatprep.subr.mxu0 0.0
    %224 = vmatpush1.msra.mxu0 %v198
    %225 = vmatprep.subr.mxu0 0.0
    %226 = vmatpush1.msra.mxu0 %v199
    %227 = vmatprep.subr.mxu0 0.0
    %228 = vmatpush1.msra.mxu0 %v200
    %229 = vmatprep.subr.mxu0 0.0
    %230 = vmatpush1.msra.mxu0 %v201
    %231 = vmatprep.subr.mxu0 0.0
    %232 = vmatpush1.msra.mxu0 %v202
    %233 = vmatprep.subr.mxu0 0.0
    %234 = vmatpush1.msra.mxu0 %v203
    %235 = vmatprep.subr.mxu0 0.0
    %236 = vmatpush1.msra.mxu0 %v204
    %237 = vmatprep.subr.mxu0 0.0
    %238 = vmatpush1.msra.mxu0 0.0
    %239 = vmatprep.subr.mxu0 0.0
    %240 = vmatpush1.msra.mxu0 0.0
    %241 = vmatprep.subr.mxu0 0.0
    %242 = vmatpush1.msra.mxu0 0.0
    %243 = vmatprep.subr.mxu0 0.0
    %244 = vmatpush1.msra.mxu0 0.0
    %245 = vmatprep.subr.mxu0 0.0
    %246 = vmatpush1.msra.mxu0 0.0
    %247 = vmatprep.subr.mxu0 0.0
    %248 = vmatpush1.msra.mxu0 0.0
    %249 = vmatprep.subr.mxu0 0.0
    %250 = vmatpush1.msra.mxu0 0.0
    %251 = vmatprep.subr.mxu0 0.0
    %252 = vmatpush1.msra.mxu0 0.0
    %253 = vmatprep.subr.mxu0 0.0
    %254 = vmatpush1.msra.mxu0 0.0
    %255 = vmatprep.subr.mxu0 0.0
    %256 = vmatpush1.msra.mxu0 0.0
    %257 = vmatprep.subr.mxu0 0.0
    %258 = vmatpush1.msra.mxu0 0.0
    %259 = vmatprep.subr.mxu0 0.0
    %260 = vmatpush1.msra.mxu0 0.0
    %261 = vmatprep.subr.mxu0 0.0
    %262 = vmatpush1.msra.mxu0 0.0
    %263 = vmatprep.subr.mxu0 0.0
    %264 = vmatpush1.msra.mxu0 0.0
    %265 = vmatprep.subr.mxu0 0.0
    %266 = vmatpush1.msra.mxu0 0.0
    %267 = vmatprep.subr.mxu0 0.0
    %268 = vmatpush1.msra.mxu0 0.0
    %269 = vmatprep.mubr.f32.mxu0 0.0
    %270 = vmatmul.mubr.f32.gmra.mrb[0].mxu0 %v187
    %v271 = vpop.f32.mrb[0].mxu0
    %v272 = vadd.f32 0.0, %v271
    %v273 = vpop.f32.mrb[0].mxu0
    %274 = vmatprep.mubr.f32.mxu0 0.0
    %275 = vmatmul.mubr.f32.gmra.mrb[0].mxu0 %v188
    %v276 = vpop.f32.mrb[0].mxu0
    %v277 = vadd.f32 0.0, %v276
    %v278 = vpop.f32.mrb[0].mxu0
    %279 = vdwg.mxu0
    %v280 = vld [vmem:[#allocation8] sm:$0xff]
    %v281 = vld [vmem:[#allocation8 + $0x8] sm:$0xff]
    %v282 = vadd.f32 %v280, %v272
    %v283 = vadd.f32 %v281, %v277
    %284 = vst [vmem:[#allocation8] sm:$0xff] %v282
    %285 = vst [vmem:[#allocation8 + $0x8] sm:$0xff] %v283
    // Predicated region
    $region30: #{tpu_custom_call.1} parent=1 // pred_check
      _
    $region31: #{tpu_custom_call.1} parent=1 // pred_check_branch
      %287 = sbr.rel (0) target = $region33
    $region32: #{tpu_custom_call.1} parent=1 // pred_region
      %s289 = ssub.s32 256, 256
      %290 = vsyncadd [#allocation4], %s289
      %s291 = sshll.u32 [#allocation8], 4
      %s292 = int_to_ptr.vmem [resolvable:$true] %s291
      %297 = dma.vmem_to_hbm [thread:$0]  %s292, 256, %s3, [#allocation4], 128, 128, 8
    $region33: #{tpu_custom_call.1} parent=1 // pred_fallthru
      _
    // Predicated region
    $region34: #{tpu_custom_call.1} parent=1 // pred_check
      _
    $region35: #{tpu_custom_call.1} parent=1 // pred_check_branch
      %299 = sbr.rel (0) target = $region37
    $region36: #{tpu_custom_call.1} parent=1 // pred_region
      %300 = dma.done [#allocation4], 256
    $region37: #{tpu_custom_call.1} parent=1 // pred_fallthru
      _
    %301 = vsyncpa [#allocation3], 1
    %302 = vsyncpa [#allocation6], 1
    %303 = vsyncpa [#allocation4], 1

</llo_original>
